<compile_context>
chip_gen: v6e
topology: v6e:2x2x1
jax: 0.10.0
libtpu: 0.0.40
codegen_flags: <defaults>
</compile_context>

<pallas_src>
import functools

import jax
import jax.numpy as jnp
from jax.experimental import pallas as pl
from jax.experimental.pallas import tpu as pltpu

_S = 16          # samples packed per row: 8 * _S = 128 input lanes (one full vreg row)
_QUANTUM = 128   # batch padding quantum (keeps row-blocks a multiple of 8 sublanes)


def _round_up(x, m):
    return ((x + m - 1) // m) * m


def _cdiv(a, b):
    return (a + b - 1) // b


def _policy_kernel(x_ref, w1_ref, b1_ref, w2_ref, b2_ref, w3_ref, b3_ref,
                   gsum_ref, o_ref, *, trans_dtype):
    # x: (R, 8*S) -- 16 samples per row, fully lane-dense.
    x = x_ref[...].astype(jnp.bfloat16)

    # fc1 + tanh:  (R, 8S) @ blockdiag(W1^T) (8S, 16S) -> (R, 16S)
    h = jnp.dot(x, w1_ref[...], preferred_element_type=jnp.float32) + b1_ref[...]
    h = jnp.tanh(h.astype(trans_dtype)).astype(jnp.bfloat16)

    # fc2 + tanh:  (R, 16S) @ (16S, 16S) -> (R, 16S)
    h = jnp.dot(h, w2_ref[...], preferred_element_type=jnp.float32) + b2_ref[...]
    h = jnp.tanh(h.astype(trans_dtype)).astype(jnp.bfloat16)

    # fc3 logits: (R, 16S) @ (16S, 4S) -> (R, 4S)
    logits = jnp.dot(h, w3_ref[...], preferred_element_type=jnp.float32) + b3_ref[...]

    # Softmax over each sample's group of 4 lanes.
    # Max-subtraction dropped: hidden layer is tanh-bounded, so
    # |logit| <= sum|w3| + |b3| (~4.3) and exp cannot overflow.
    # TODO(synk): re-introduce a max shift if reused with training-scale logits.
    e = jnp.exp(logits.astype(trans_dtype)).astype(jnp.bfloat16)          # (R, 4S)

    # Per-sample sums broadcast to all 4 lanes via a 0/1 block-diag matmul.
    denom = jnp.dot(e, gsum_ref[...], preferred_element_type=jnp.float32)  # (R, 4S)
    r = pl.reciprocal(denom, approx=True)   # EUP vrcp (free-ish slot)
    r = r * (2.0 - denom * r)               # two Newton steps on the VPU ->
    r = r * (2.0 - denom * r)               # exact normalization (~1e-6)

    o_ref[...] = (e.astype(jnp.float32) * r).astype(o_ref.dtype)


def policy_gradient_network(state, params, *, tile_b=32768,
                            transcendental_dtype=jnp.bfloat16):
    """state: (B, 8) float32 (or bfloat16).
    params: PyTorch-oriented  w1 (16,8), b1 (16,), w2 (16,16), b2 (16,),
            w3 (4,16), b3 (4,)   (biases may also be (out, 1)).
    Returns (B, 4) float32 action probabilities."""
    B = state.shape[0]
    S = _S

    # Block-diagonal weights (bf16 MXU operands, built once; tiny).
    eye = jnp.eye(S, dtype=jnp.bfloat16)
    w1b = jnp.kron(eye, params["w1"].T.astype(jnp.bfloat16))        # (8S, 16S)
    w2b = jnp.kron(eye, params["w2"].T.astype(jnp.bfloat16))        # (16S, 16S)
    w3b = jnp.kron(eye, params["w3"].T.astype(jnp.bfloat16))        # (16S, 4S)
    b1b = jnp.tile(params["b1"].reshape(-1).astype(jnp.float32), S)[None, :]   # (1, 16S)
    b2b = jnp.tile(params["b2"].reshape(-1).astype(jnp.float32), S)[None, :]   # (1, 16S)
    b3b = jnp.tile(params["b3"].reshape(-1).astype(jnp.float32), S)[None, :]   # (1, 4S)
    gsum = jnp.kron(eye, jnp.ones((4, 4), jnp.bfloat16))             # (4S, 4S)

    # Batch tiling: >=2 grid steps for non-tiny batches (v7x 2-TC sharding),
    # pad only to a 128-sample quantum (not to the tile size).
    n_tiles = max(_cdiv(B, tile_b), 1)
    if n_tiles < 2 and B >= 2 * _QUANTUM:
        n_tiles = 2
    tb = _round_up(_cdiv(B, n_tiles), _QUANTUM)   # samples per grid step
    b_pad = n_tiles * tb

    x = state
    if b_pad != B:
        x = jnp.pad(x, ((0, b_pad - B), (0, 0)))
    # Free contiguous reshape: row r holds samples [r*S, (r+1)*S), feature-major.
    x_rows = x.reshape(b_pad // S, 8 * S)

    rows_per_tile = tb // S                        # multiple of 8 (tb % 128 == 0)
    kern = functools.partial(_policy_kernel, trans_dtype=transcendental_dtype)

    out_rows = pl.pallas_call(
        kern,
        out_shape=jax.ShapeDtypeStruct((b_pad // S, 4 * S), jnp.float32),
        grid=(n_tiles,),
        in_specs=[
            pl.BlockSpec((rows_per_tile, 8 * S), lambda i: (i, 0)),   # state rows (lane-dense)
            pl.BlockSpec((8 * S, 16 * S), lambda i: (0, 0)),          # w1 block-diag (VMEM-resident)
            pl.BlockSpec((1, 16 * S), lambda i: (0, 0)),              # b1
            pl.BlockSpec((16 * S, 16 * S), lambda i: (0, 0)),         # w2 block-diag
            pl.BlockSpec((1, 16 * S), lambda i: (0, 0)),              # b2
            pl.BlockSpec((16 * S, 4 * S), lambda i: (0, 0)),          # w3 block-diag
            pl.BlockSpec((1, 4 * S), lambda i: (0, 0)),               # b3
            pl.BlockSpec((4 * S, 4 * S), lambda i: (0, 0)),           # softmax group-sum matrix
        ],
        out_specs=pl.BlockSpec((rows_per_tile, 4 * S), lambda i: (i, 0)),
        compiler_params=pltpu.CompilerParams(
            dimension_semantics=("parallel",),        # megacore sharding on v7x
            vmem_limit_bytes=32 * 1024 * 1024,        # big tiles fit on every gen
        ),
    )(x_rows, w1b, b1b, w2b, b2b, w3b, b3b, gsum)

    probs = out_rows.reshape(b_pad, 4)                # free contiguous reshape
    return probs if b_pad == B else probs[:B]


def init_params(key):
    """nn.Linear-style init U[-1/sqrt(fan_in), +1/sqrt(fan_in)];
    weights in PyTorch (out_features, in_features) orientation, biases (out,)."""
    def linear(key, fan_in, fan_out):
        kw, kb = jax.random.split(key)
        bound = 1.0 / jnp.sqrt(float(fan_in))
        w = jax.random.uniform(kw, (fan_out, fan_in), jnp.float32, -bound, bound)
        b = jax.random.uniform(kb, (fan_out,), jnp.float32, -bound, bound)
        return w, b

    k1, k2, k3 = jax.random.split(key, 3)
    w1, b1 = linear(k1, 8, 16)
    w2, b2 = linear(k2, 16, 16)
    w3, b3 = linear(k3, 16, 4)
    return {"w1": w1, "b1": b1, "w2": w2, "b2": b2, "w3": w3, "b3": b3}


def _reference(state, p):
    h = jnp.tanh(state @ p["w1"].T + p["b1"])
    h = jnp.tanh(h @ p["w2"].T + p["b2"])
    return jax.nn.softmax(h @ p["w3"].T + p["b3"], axis=-1)


if __name__ == "__main__":
    key = jax.random.PRNGKey(0)
    kp, kx1, kx2 = jax.random.split(key, 3)
    params = init_params(kp)

    # Small case consistent with the module (batch=2, 8 state features).
    # Default path: bf16 matmul operands + bf16 tanh/exp (v6e/v7x sweet spot).
    B = 2
    state = jax.random.normal(kx1, (B, 8), dtype=jnp.float32)
    out = jax.block_until_ready(policy_gradient_network(state, params))
    ref = _reference(state, params)
    assert out.shape == (B, 4)
    assert bool(jnp.all(jnp.abs(jnp.sum(out, axis=-1) - 1.0) < 1e-3))   # exact normalization
    assert bool(jnp.allclose(out, ref, atol=3e-2, rtol=3e-2))           # bf16 transcendental path

    # Larger case: exercises batch padding, a >=2-step grid, and the f32
    # transcendental path (tight accuracy; recommended on v5e).
    B2 = 300
    state2 = jax.random.normal(kx2, (B2, 8), dtype=jnp.float32)
    out2 = jax.block_until_ready(
        policy_gradient_network(state2, params, transcendental_dtype=jnp.float32))
    ref2 = _reference(state2, params)
    assert out2.shape == (B2, 4)
    assert bool(jnp.all(jnp.abs(jnp.sum(out2, axis=-1) - 1.0) < 1e-3))
    assert bool(jnp.allclose(out2, ref2, atol=1e-2, rtol=1e-2))

    print("KERNEL_OK")
</pallas_src>

<mosaic_0001>
module attributes {stable_mosaic.version = 11 : i64} {
  func.func @_policy_kernel(%arg0: i32, %arg1: memref<8x128xf32, #tpu.memory_space<vmem>>, %arg2: memref<128x256xbf16, #tpu.memory_space<vmem>>, %arg3: memref<1x256xf32, #tpu.memory_space<vmem>>, %arg4: memref<256x256xbf16, #tpu.memory_space<vmem>>, %arg5: memref<1x256xf32, #tpu.memory_space<vmem>>, %arg6: memref<256x64xbf16, #tpu.memory_space<vmem>>, %arg7: memref<1x64xf32, #tpu.memory_space<vmem>>, %arg8: memref<64x64xbf16, #tpu.memory_space<vmem>>, %arg9: memref<8x64xf32, #tpu.memory_space<vmem>>) attributes {dimension_semantics = [#tpu.dimension_semantics<parallel>], iteration_bounds = array<i64: 1>, scalar_prefetch = 0 : i64, scratch_operands = 0 : i64, tpu.core_type = #tpu.core_type<tc>, window_params = [{transform_indices = @transform_0, window_bounds = array<i64: 8, 128>}, {pipeline_mode = #tpu.pipeline_mode<synchronous>, transform_indices = @transform_1, window_bounds = array<i64: 128, 256>}, {pipeline_mode = #tpu.pipeline_mode<synchronous>, transform_indices = @transform_2, window_bounds = array<i64: 1, 256>}, {pipeline_mode = #tpu.pipeline_mode<synchronous>, transform_indices = @transform_3, window_bounds = array<i64: 256, 256>}, {pipeline_mode = #tpu.pipeline_mode<synchronous>, transform_indices = @transform_4, window_bounds = array<i64: 1, 256>}, {pipeline_mode = #tpu.pipeline_mode<synchronous>, transform_indices = @transform_5, window_bounds = array<i64: 256, 64>}, {pipeline_mode = #tpu.pipeline_mode<synchronous>, transform_indices = @transform_6, window_bounds = array<i64: 1, 64>}, {pipeline_mode = #tpu.pipeline_mode<synchronous>, transform_indices = @transform_7, window_bounds = array<i64: 64, 64>}, {transform_indices = @transform_8, window_bounds = array<i64: 8, 64>}]} {
    %c0 = arith.constant 0 : index
    %c0_0 = arith.constant 0 : index
    %0 = vector.load %arg1[%c0, %c0_0] : memref<8x128xf32, #tpu.memory_space<vmem>>, vector<8x128xf32>
    %1 = arith.truncf %0 : vector<8x128xf32> to vector<8x128xbf16>
    %c0_1 = arith.constant 0 : index
    %c0_2 = arith.constant 0 : index
    %2 = vector.load %arg2[%c0_1, %c0_2] : memref<128x256xbf16, #tpu.memory_space<vmem>>, vector<128x256xbf16>
    %cst = arith.constant dense<0.000000e+00> : vector<8x256xf32>
    %3 = tpu.matmul %1, %2, %cst {dimension_numbers = #tpu.dot_dimension_numbers<[1], [0], [0], [1], [0, 0, 1, 1], [], []>} : vector<8x128xbf16>, vector<128x256xbf16>, vector<8x256xf32> -> vector<8x256xf32>
    %c0_3 = arith.constant 0 : index
    %c0_4 = arith.constant 0 : index
    %4 = vector.load %arg3[%c0_3, %c0_4] : memref<1x256xf32, #tpu.memory_space<vmem>>, vector<1x256xf32>
    %5 = vector.broadcast %4 : vector<1x256xf32> to vector<8x256xf32>
    %6 = arith.addf %3, %5 : vector<8x256xf32>
    %7 = arith.truncf %6 : vector<8x256xf32> to vector<8x256xbf16>
    %8 = math.tanh %7 : vector<8x256xbf16>
    %c0_5 = arith.constant 0 : index
    %c0_6 = arith.constant 0 : index
    %9 = vector.load %arg4[%c0_5, %c0_6] : memref<256x256xbf16, #tpu.memory_space<vmem>>, vector<256x256xbf16>
    %cst_7 = arith.constant dense<0.000000e+00> : vector<8x256xf32>
    %10 = tpu.matmul %8, %9, %cst_7 {dimension_numbers = #tpu.dot_dimension_numbers<[1], [0], [0], [1], [0, 0, 1, 1], [], []>} : vector<8x256xbf16>, vector<256x256xbf16>, vector<8x256xf32> -> vector<8x256xf32>
    %c0_8 = arith.constant 0 : index
    %c0_9 = arith.constant 0 : index
    %11 = vector.load %arg5[%c0_8, %c0_9] : memref<1x256xf32, #tpu.memory_space<vmem>>, vector<1x256xf32>
    %12 = vector.broadcast %11 : vector<1x256xf32> to vector<8x256xf32>
    %13 = arith.addf %10, %12 : vector<8x256xf32>
    %14 = arith.truncf %13 : vector<8x256xf32> to vector<8x256xbf16>
    %15 = math.tanh %14 : vector<8x256xbf16>
    %c0_10 = arith.constant 0 : index
    %c0_11 = arith.constant 0 : index
    %16 = vector.load %arg6[%c0_10, %c0_11] : memref<256x64xbf16, #tpu.memory_space<vmem>>, vector<256x64xbf16>
    %cst_12 = arith.constant dense<0.000000e+00> : vector<8x64xf32>
    %17 = tpu.matmul %15, %16, %cst_12 {dimension_numbers = #tpu.dot_dimension_numbers<[1], [0], [0], [1], [0, 0, 1, 1], [], []>} : vector<8x256xbf16>, vector<256x64xbf16>, vector<8x64xf32> -> vector<8x64xf32>
    %c0_13 = arith.constant 0 : index
    %c0_14 = arith.constant 0 : index
    %18 = vector.load %arg7[%c0_13, %c0_14] : memref<1x64xf32, #tpu.memory_space<vmem>>, vector<1x64xf32>
    %19 = vector.broadcast %18 : vector<1x64xf32> to vector<8x64xf32>
    %20 = arith.addf %17, %19 : vector<8x64xf32>
    %21 = arith.truncf %20 : vector<8x64xf32> to vector<8x64xbf16>
    %22 = math.exp %21 : vector<8x64xbf16>
    %c0_15 = arith.constant 0 : index
    %c0_16 = arith.constant 0 : index
    %23 = vector.load %arg8[%c0_15, %c0_16] : memref<64x64xbf16, #tpu.memory_space<vmem>>, vector<64x64xbf16>
    %cst_17 = arith.constant dense<0.000000e+00> : vector<8x64xf32>
    %24 = tpu.matmul %22, %23, %cst_17 {dimension_numbers = #tpu.dot_dimension_numbers<[1], [0], [0], [1], [0, 0, 1, 1], [], []>} : vector<8x64xbf16>, vector<64x64xbf16>, vector<8x64xf32> -> vector<8x64xf32>
    %25 = tpu.reciprocal %24 {approx = true} : vector<8x64xf32> -> vector<8x64xf32>
    %26 = arith.mulf %24, %25 : vector<8x64xf32>
    %cst_18 = arith.constant 2.000000e+00 : f32
    %27 = vector.broadcast %cst_18 : f32 to vector<8x64xf32>
    %28 = arith.subf %27, %26 : vector<8x64xf32>
    %29 = arith.mulf %25, %28 : vector<8x64xf32>
    %30 = arith.mulf %24, %29 : vector<8x64xf32>
    %cst_19 = arith.constant 2.000000e+00 : f32
    %31 = vector.broadcast %cst_19 : f32 to vector<8x64xf32>
    %32 = arith.subf %31, %30 : vector<8x64xf32>
    %33 = arith.mulf %29, %32 : vector<8x64xf32>
    %34 = arith.extf %22 : vector<8x64xbf16> to vector<8x64xf32>
    %35 = arith.mulf %34, %33 : vector<8x64xf32>
    %c0_20 = arith.constant 0 : index
    %c0_21 = arith.constant 0 : index
    %36 = vector.load %arg9[%c0_20, %c0_21] : memref<8x64xf32, #tpu.memory_space<vmem>>, vector<8x64xf32>
    tpu.vector_store %arg9[%c0_20, %c0_21], %35 {strides = array<i32>} : memref<8x64xf32, #tpu.memory_space<vmem>>, vector<8x64xf32>,
    return
  }
  func.func @transform_0(%arg0: i32) -> (i32, i32) {
    %c0_i32 = arith.constant 0 : i32
    %c0_i32_0 = arith.constant 0 : i32
    return %arg0, %c0_i32 : i32, i32
  }
  func.func @transform_1(%arg0: i32) -> (i32, i32) {
    %c0_i32 = arith.constant 0 : i32
    %c0_i32_0 = arith.constant 0 : i32
    %c0_i32_1 = arith.constant 0 : i32
    return %c0_i32, %c0_i32_0 : i32, i32
  }
  func.func @transform_2(%arg0: i32) -> (i32, i32) {
    %c0_i32 = arith.constant 0 : i32
    %c0_i32_0 = arith.constant 0 : i32
    %c0_i32_1 = arith.constant 0 : i32
    return %c0_i32, %c0_i32_0 : i32, i32
  }
  func.func @transform_3(%arg0: i32) -> (i32, i32) {
    %c0_i32 = arith.constant 0 : i32
    %c0_i32_0 = arith.constant 0 : i32
    %c0_i32_1 = arith.constant 0 : i32
    return %c0_i32, %c0_i32_0 : i32, i32
  }
  func.func @transform_4(%arg0: i32) -> (i32, i32) {
    %c0_i32 = arith.constant 0 : i32
    %c0_i32_0 = arith.constant 0 : i32
    %c0_i32_1 = arith.constant 0 : i32
    return %c0_i32, %c0_i32_0 : i32, i32
  }
  func.func @transform_5(%arg0: i32) -> (i32, i32) {
    %c0_i32 = arith.constant 0 : i32
    %c0_i32_0 = arith.constant 0 : i32
    %c0_i32_1 = arith.constant 0 : i32
    return %c0_i32, %c0_i32_0 : i32, i32
  }
  func.func @transform_6(%arg0: i32) -> (i32, i32) {
    %c0_i32 = arith.constant 0 : i32
    %c0_i32_0 = arith.constant 0 : i32
    %c0_i32_1 = arith.constant 0 : i32
    return %c0_i32, %c0_i32_0 : i32, i32
  }
  func.func @transform_7(%arg0: i32) -> (i32, i32) {
    %c0_i32 = arith.constant 0 : i32
    %c0_i32_0 = arith.constant 0 : i32
    %c0_i32_1 = arith.constant 0 : i32
    return %c0_i32, %c0_i32_0 : i32, i32
  }
  func.func @transform_8(%arg0: i32) -> (i32, i32) {
    %c0_i32 = arith.constant 0 : i32
    %c0_i32_0 = arith.constant 0 : i32
    return %arg0, %c0_i32 : i32, i32
  }
}

</mosaic_0001>

<llo_original>
// kernel: tpu_custom_call.1
$region0: #{tpu_custom_call.1}
  #allocation0 [shape = 'u32[]', space=smem, size = 0x4, offset = 0x4, fixed_abs, tag = 'smem constant byte address 0x4 - core index']
  #allocation1 [shape = 'u32[144,128]{1,0:T(1,128)}', space=vmem, size = 0x12000, scoped, tag = 'internal scratch']
  %s0 = inlined_call_operand.vmem [shape: f32[8,128], index: 0, kind: input, shape index: {}]
  %s1 = inlined_call_operand.vmem [shape: bf16[128,256], index: 1, kind: input, shape index: {}]
  %s2 = inlined_call_operand.vmem [shape: f32[1,256], index: 2, kind: input, shape index: {}]
  %s3 = inlined_call_operand.hbm [shape: bf16[256,256], index: 3, kind: input, shape index: {}]
  %s4 = inlined_call_operand.vmem [shape: f32[1,256], index: 4, kind: input, shape index: {}]
  %s5 = inlined_call_operand.vmem [shape: bf16[256,64], index: 5, kind: input, shape index: {}]
  %s6 = inlined_call_operand.vmem [shape: f32[1,64], index: 6, kind: input, shape index: {}]
  %s7 = inlined_call_operand.vmem [shape: bf16[64,64], index: 7, kind: input, shape index: {}]
  %s8 = inlined_call_operand.hbm [shape: f32[8,64], index: 8, kind: output, shape index: {}]
  %s9 = sld [smem:[#allocation0]]
  $region46: #{tpu_custom_call.1} parent=0
    _
  %s11 = ssub.s32 1, %s9
  %s12 = scalar_select 0, %s11, %s9
  $region1: #{tpu_custom_call.1} parent=0
    #allocation2 [shape = 'u8[131072]{0}', space=vmem, size = 0x20000, scoped, tag = 'input window, operand 3, single buffered']
    #allocation3 [shape = 's32[1]{0}', space=sflag, size = 0x4, scoped, tag = 'scoped memory for tpu_custom_call.1']
    #allocation4 [shape = 's32[1]{0}', space=sflag, size = 0x4, scoped, tag = 'scoped memory for tpu_custom_call.1']
    #allocation5 [shape = 'u8[4096]{0}', space=vmem, size = 0x1000, scoped, tag = 'output window, operand 0, single buffered']
    %13 = vsyncpa [#allocation3], 0
    %14 = vsyncpa [#allocation4], 0
    // Predicated region
    $region2: #{tpu_custom_call.1} parent=1 // pred_check
      _
    $region3: #{tpu_custom_call.1} parent=1 // pred_check_branch
      %16 = sbr.rel (0) target = $region5
    $region4: #{tpu_custom_call.1} parent=1 // pred_region
      _
    $region5: #{tpu_custom_call.1} parent=1 // pred_fallthru
      _
    // Predicated region
    $region6: #{tpu_custom_call.1} parent=1 // pred_check
      _
    $region7: #{tpu_custom_call.1} parent=1 // pred_check_branch
      %18 = sbr.rel (0) target = $region9
    $region8: #{tpu_custom_call.1} parent=1 // pred_region
      _
    $region9: #{tpu_custom_call.1} parent=1 // pred_fallthru
      _
    // Predicated region
    $region10: #{tpu_custom_call.1} parent=1 // pred_check
      _
    $region11: #{tpu_custom_call.1} parent=1 // pred_check_branch
      %20 = sbr.rel (0) target = $region13
    $region12: #{tpu_custom_call.1} parent=1 // pred_region
      _
    $region13: #{tpu_custom_call.1} parent=1 // pred_fallthru
      _
    // Predicated region
    $region14: #{tpu_custom_call.1} parent=1 // pred_check
      _
    $region15: #{tpu_custom_call.1} parent=1 // pred_check_branch
      %22 = sbr.rel (0) target = $region17
    $region16: #{tpu_custom_call.1} parent=1 // pred_region
      %s24 = ssub.s32 4096, 4096
      %25 = vsyncadd [#allocation3], %s24
      %s26 = sshll.u32 [#allocation2], 4
      %s27 = int_to_ptr.vmem [resolvable:$true] %s26
      %32 = dma.hbm_to_vmem [thread:$0]  %s3, 4096, %s27, [#allocation3], 128, 128, 8
    $region17: #{tpu_custom_call.1} parent=1 // pred_fallthru
      _
    // Predicated region
    $region18: #{tpu_custom_call.1} parent=1 // pred_check
      _
    $region19: #{tpu_custom_call.1} parent=1 // pred_check_branch
      %34 = sbr.rel (0) target = $region21
    $region20: #{tpu_custom_call.1} parent=1 // pred_region
      _
    $region21: #{tpu_custom_call.1} parent=1 // pred_fallthru
      _
    // Predicated region
    $region22: #{tpu_custom_call.1} parent=1 // pred_check
      _
    $region23: #{tpu_custom_call.1} parent=1 // pred_check_branch
      %36 = sbr.rel (0) target = $region25
    $region24: #{tpu_custom_call.1} parent=1 // pred_region
      _
    $region25: #{tpu_custom_call.1} parent=1 // pred_fallthru
      _
    // Predicated region
    $region26: #{tpu_custom_call.1} parent=1 // pred_check
      _
    $region27: #{tpu_custom_call.1} parent=1 // pred_check_branch
      %38 = sbr.rel (0) target = $region29
    $region28: #{tpu_custom_call.1} parent=1 // pred_region
      _
    $region29: #{tpu_custom_call.1} parent=1 // pred_fallthru
      _
    // Predicated region
    $region30: #{tpu_custom_call.1} parent=1 // pred_check
      _
    $region31: #{tpu_custom_call.1} parent=1 // pred_check_branch
      %40 = sbr.rel (0) target = $region33
    $region32: #{tpu_custom_call.1} parent=1 // pred_region
      _
    $region33: #{tpu_custom_call.1} parent=1 // pred_fallthru
      _
    // Predicated region
    $region34: #{tpu_custom_call.1} parent=1 // pred_check
      _
    $region35: #{tpu_custom_call.1} parent=1 // pred_check_branch
      %42 = sbr.rel (0) target = $region37
    $region36: #{tpu_custom_call.1} parent=1 // pred_region
      %43 = dma.done [#allocation3], 4096
    $region37: #{tpu_custom_call.1} parent=1 // pred_fallthru
      _
    %v45 = vld [vmem:[%s0] sm:$0xff]
    %v46 = vpack.c.bf16 %v45, %v45
    %v47 = vld [vmem:[%s1] sm:$0xff]
    %v48 = vld [vmem:[%s1 + $0x8] sm:$0xff]
    %v49 = vld [vmem:[%s1 + $0x10] sm:$0xff]
    %v50 = vld [vmem:[%s1 + $0x18] sm:$0xff]
    %v51 = vld [vmem:[%s1 + $0x20] sm:$0xff]
    %v52 = vld [vmem:[%s1 + $0x28] sm:$0xff]
    %v53 = vld [vmem:[%s1 + $0x30] sm:$0xff]
    %v54 = vld [vmem:[%s1 + $0x38] sm:$0xff]
    %v55 = vld [vmem:[%s1 + $0x40] sm:$0xff]
    %v56 = vld [vmem:[%s1 + $0x48] sm:$0xff]
    %v57 = vld [vmem:[%s1 + $0x50] sm:$0xff]
    %v58 = vld [vmem:[%s1 + $0x58] sm:$0xff]
    %v59 = vld [vmem:[%s1 + $0x60] sm:$0xff]
    %v60 = vld [vmem:[%s1 + $0x68] sm:$0xff]
    %v61 = vld [vmem:[%s1 + $0x70] sm:$0xff]
    %v62 = vld [vmem:[%s1 + $0x78] sm:$0xff]
    %v63 = vld [vmem:[%s2] sm:$0x3]
    %v65 = vlaneseq
    %v66 = vshrl.u32 %v65, 7
    %v67 = vsub.s32 0, %v66
    %v68 = vrot.slane %v63, %v67
    %v69 = vlaneseq
    %v70 = vshrl.u32 %v69, 7
    %v71 = vsub.s32 1, %v70
    %v72 = vrot.slane %v63, %v71
    %v91 = vunpack.c.l.b16 %v47
    %v92 = vunpack.c.h.b16 %v47
    %v93 = vunpack.c.l.b16 %v48
    %v94 = vunpack.c.h.b16 %v48
    %v95 = vunpack.c.l.b16 %v49
    %v96 = vunpack.c.h.b16 %v49
    %v97 = vunpack.c.l.b16 %v50
    %v98 = vunpack.c.h.b16 %v50
    %v99 = vunpack.c.l.b16 %v51
    %v100 = vunpack.c.h.b16 %v51
    %v101 = vunpack.c.l.b16 %v52
    %v102 = vunpack.c.h.b16 %v52
    %v103 = vunpack.c.l.b16 %v53
    %v104 = vunpack.c.h.b16 %v53
    %v105 = vunpack.c.l.b16 %v54
    %v106 = vunpack.c.h.b16 %v54
    %v107 = vunpack.c.l.b16 %v55
    %v108 = vunpack.c.h.b16 %v55
    %v109 = vunpack.c.l.b16 %v56
    %v110 = vunpack.c.h.b16 %v56
    %v111 = vunpack.c.l.b16 %v57
    %v112 = vunpack.c.h.b16 %v57
    %v113 = vunpack.c.l.b16 %v58
    %v114 = vunpack.c.h.b16 %v58
    %v115 = vunpack.c.l.b16 %v59
    %v116 = vunpack.c.h.b16 %v59
    %v117 = vunpack.c.l.b16 %v60
    %v118 = vunpack.c.h.b16 %v60
    %v119 = vunpack.c.l.b16 %v61
    %v120 = vunpack.c.h.b16 %v61
    %v121 = vunpack.c.l.b16 %v62
    %v122 = vunpack.c.h.b16 %v62
    %v123 = vpack.c.b16 %v93, %v91
    %v124 = vpack.c.b16 %v94, %v92
    %v125 = vpack.c.b16 %v97, %v95
    %v126 = vpack.c.b16 %v98, %v96
    %v127 = vpack.c.b16 %v101, %v99
    %v128 = vpack.c.b16 %v102, %v100
    %v129 = vpack.c.b16 %v105, %v103
    %v130 = vpack.c.b16 %v106, %v104
    %v131 = vpack.c.b16 %v109, %v107
    %v132 = vpack.c.b16 %v110, %v108
    %v133 = vpack.c.b16 %v113, %v111
    %v134 = vpack.c.b16 %v114, %v112
    %v135 = vpack.c.b16 %v117, %v115
    %v136 = vpack.c.b16 %v118, %v116
    %v137 = vpack.c.b16 %v121, %v119
    %v138 = vpack.c.b16 %v122, %v120
    %155 = vmatprep.subr.bf16.mxu0 %v138
    %156 = vmatpush1.bf16.msra.mxu0 %v137
    %157 = vmatprep.subr.bf16.mxu0 %v136
    %158 = vmatpush1.bf16.msra.mxu0 %v135
    %159 = vmatprep.subr.bf16.mxu0 %v134
    %160 = vmatpush1.bf16.msra.mxu0 %v133
    %161 = vmatprep.subr.bf16.mxu0 %v132
    %162 = vmatpush1.bf16.msra.mxu0 %v131
    %163 = vmatprep.subr.bf16.mxu0 %v130
    %164 = vmatpush1.bf16.msra.mxu0 %v129
    %165 = vmatprep.subr.bf16.mxu0 %v128
    %166 = vmatpush1.bf16.msra.mxu0 %v127
    %167 = vmatprep.subr.bf16.mxu0 %v126
    %168 = vmatpush1.bf16.msra.mxu0 %v125
    %169 = vmatprep.subr.bf16.mxu0 %v124
    %170 = vmatpush1.bf16.msra.mxu0 %v123
    %171 = vmatprep.subr.bf16.mxu0 0
    %172 = vmatpush2.bf16.msra.mxu0 0
    %173 = vmatprep.subr.bf16.mxu0 0
    %174 = vmatpush2.bf16.msra.mxu0 0
    %175 = vmatprep.subr.bf16.mxu0 0
    %176 = vmatpush2.bf16.msra.mxu0 0
    %177 = vmatprep.subr.bf16.mxu0 0
    %178 = vmatpush2.bf16.msra.mxu0 0
    %179 = vmatprep.subr.bf16.mxu0 0
    %180 = vmatpush2.bf16.msra.mxu0 0
    %181 = vmatprep.subr.bf16.mxu0 0
    %182 = vmatpush2.bf16.msra.mxu0 0
    %183 = vmatprep.subr.bf16.mxu0 0
    %184 = vmatpush2.bf16.msra.mxu0 0
    %185 = vmatprep.subr.bf16.mxu0 0
    %186 = vmatpush2.bf16.msra.mxu0 0
    %187 = vmatprep.mubr.bf16.mxu0 0
    %188 = vmatmul.mubr.bf16.gmra.mxu0 %v46
    %v189 = vpop.f32.mrf.mxu0
    %v190 = vadd.f32 %v68, %v189
    %v191 = vpop.f32.mrf.mxu0
    %v192 = vadd.f32 %v72, %v191
    %v193 = vpop.f32.mrf.mxu0
    %v194 = vpop.f32.mrf.mxu0
    %195 = vdwg.mxu0
    %v196 = vpack.c.bf16 %v190, %v190
    %v197 = vpack.c.bf16 %v192, %v192
    %v198 = vtanh.bf16.pop %v196
    %v199 = vtanh.bf16.pop %v197
    %v200 = vld [vmem:[#allocation2] sm:$0xff]
    %v201 = vld [vmem:[#allocation2 + $0x8] sm:$0xff]
    %v202 = vld [vmem:[#allocation2 + $0x10] sm:$0xff]
    %v203 = vld [vmem:[#allocation2 + $0x18] sm:$0xff]
    %v204 = vld [vmem:[#allocation2 + $0x20] sm:$0xff]
    %v205 = vld [vmem:[#allocation2 + $0x28] sm:$0xff]
    %v206 = vld [vmem:[#allocation2 + $0x30] sm:$0xff]
    %v207 = vld [vmem:[#allocation2 + $0x38] sm:$0xff]
    %v208 = vld [vmem:[#allocation2 + $0x40] sm:$0xff]
    %v209 = vld [vmem:[#allocation2 + $0x48] sm:$0xff]
    %v210 = vld [vmem:[#allocation2 + $0x50] sm:$0xff]
    %v211 = vld [vmem:[#allocation2 + $0x58] sm:$0xff]
    %v212 = vld [vmem:[#allocation2 + $0x60] sm:$0xff]
    %v213 = vld [vmem:[#allocation2 + $0x68] sm:$0xff]
    %v214 = vld [vmem:[#allocation2 + $0x70] sm:$0xff]
    %v215 = vld [vmem:[#allocation2 + $0x78] sm:$0xff]
    %v216 = vld [vmem:[#allocation2 + $0x80] sm:$0xff]
    %v217 = vld [vmem:[#allocation2 + $0x88] sm:$0xff]
    %v218 = vld [vmem:[#allocation2 + $0x90] sm:$0xff]
    %v219 = vld [vmem:[#allocation2 + $0x98] sm:$0xff]
    %v220 = vld [vmem:[#allocation2 + $0xa0] sm:$0xff]
    %v221 = vld [vmem:[#allocation2 + $0xa8] sm:$0xff]
    %v222 = vld [vmem:[#allocation2 + $0xb0] sm:$0xff]
    %v223 = vld [vmem:[#allocation2 + $0xb8] sm:$0xff]
    %v224 = vld [vmem:[#allocation2 + $0xc0] sm:$0xff]
    %v225 = vld [vmem:[#allocation2 + $0xc8] sm:$0xff]
    %v226 = vld [vmem:[#allocation2 + $0xd0] sm:$0xff]
    %v227 = vld [vmem:[#allocation2 + $0xd8] sm:$0xff]
    %v228 = vld [vmem:[#allocation2 + $0xe0] sm:$0xff]
    %v229 = vld [vmem:[#allocation2 + $0xe8] sm:$0xff]
    %v230 = vld [vmem:[#allocation2 + $0xf0] sm:$0xff]
    %v231 = vld [vmem:[#allocation2 + $0xf8] sm:$0xff]
    %v232 = vld [vmem:[%s4] sm:$0x3]
    %v234 = vlaneseq
    %v235 = vshrl.u32 %v234, 7
    %v236 = vsub.s32 0, %v235
    %v237 = vrot.slane %v232, %v236
    %v238 = vlaneseq
    %v239 = vshrl.u32 %v238, 7
    %v240 = vsub.s32 1, %v239
    %v241 = vrot.slane %v232, %v240
    %v276 = vunpack.c.l.b16 %v200
    %v277 = vunpack.c.h.b16 %v200
    %v278 = vunpack.c.l.b16 %v201
    %v279 = vunpack.c.h.b16 %v201
    %v280 = vunpack.c.l.b16 %v202
    %v281 = vunpack.c.h.b16 %v202
    %v282 = vunpack.c.l.b16 %v203
    %v283 = vunpack.c.h.b16 %v203
    %v284 = vunpack.c.l.b16 %v204
    %v285 = vunpack.c.h.b16 %v204
    %v286 = vunpack.c.l.b16 %v205
    %v287 = vunpack.c.h.b16 %v205
    %v288 = vunpack.c.l.b16 %v206
    %v289 = vunpack.c.h.b16 %v206
    %v290 = vunpack.c.l.b16 %v207
    %v291 = vunpack.c.h.b16 %v207
    %v292 = vunpack.c.l.b16 %v208
    %v293 = vunpack.c.h.b16 %v208
    %v294 = vunpack.c.l.b16 %v209
    %v295 = vunpack.c.h.b16 %v209
    %v296 = vunpack.c.l.b16 %v210
    %v297 = vunpack.c.h.b16 %v210
    %v298 = vunpack.c.l.b16 %v211
    %v299 = vunpack.c.h.b16 %v211
    %v300 = vunpack.c.l.b16 %v212
    %v301 = vunpack.c.h.b16 %v212
    %v302 = vunpack.c.l.b16 %v213
    %v303 = vunpack.c.h.b16 %v213
    %v304 = vunpack.c.l.b16 %v214
    %v305 = vunpack.c.h.b16 %v214
    %v306 = vunpack.c.l.b16 %v215
    %v307 = vunpack.c.h.b16 %v215
    %v308 = vunpack.c.l.b16 %v216
    %v309 = vunpack.c.h.b16 %v216
    %v310 = vunpack.c.l.b16 %v217
    %v311 = vunpack.c.h.b16 %v217
    %v312 = vunpack.c.l.b16 %v218
    %v313 = vunpack.c.h.b16 %v218
    %v314 = vunpack.c.l.b16 %v219
    %v315 = vunpack.c.h.b16 %v219
    %v316 = vunpack.c.l.b16 %v220
    %v317 = vunpack.c.h.b16 %v220
    %v318 = vunpack.c.l.b16 %v221
    %v319 = vunpack.c.h.b16 %v221
    %v320 = vunpack.c.l.b16 %v222
    %v321 = vunpack.c.h.b16 %v222
    %v322 = vunpack.c.l.b16 %v223
    %v323 = vunpack.c.h.b16 %v223
    %v324 = vunpack.c.l.b16 %v224
    %v325 = vunpack.c.h.b16 %v224
    %v326 = vunpack.c.l.b16 %v225
    %v327 = vunpack.c.h.b16 %v225
    %v328 = vunpack.c.l.b16 %v226
    %v329 = vunpack.c.h.b16 %v226
    %v330 = vunpack.c.l.b16 %v227
    %v331 = vunpack.c.h.b16 %v227
    %v332 = vunpack.c.l.b16 %v228
    %v333 = vunpack.c.h.b16 %v228
    %v334 = vunpack.c.l.b16 %v229
    %v335 = vunpack.c.h.b16 %v229
    %v336 = vunpack.c.l.b16 %v230
    %v337 = vunpack.c.h.b16 %v230
    %v338 = vunpack.c.l.b16 %v231
    %v339 = vunpack.c.h.b16 %v231
    %v340 = vpack.c.b16 %v278, %v276
    %v341 = vpack.c.b16 %v279, %v277
    %v342 = vpack.c.b16 %v282, %v280
    %v343 = vpack.c.b16 %v283, %v281
    %v344 = vpack.c.b16 %v286, %v284
    %v345 = vpack.c.b16 %v287, %v285
    %v346 = vpack.c.b16 %v290, %v288
    %v347 = vpack.c.b16 %v291, %v289
    %v348 = vpack.c.b16 %v294, %v292
    %v349 = vpack.c.b16 %v295, %v293
    %v350 = vpack.c.b16 %v298, %v296
    %v351 = vpack.c.b16 %v299, %v297
    %v352 = vpack.c.b16 %v302, %v300
    %v353 = vpack.c.b16 %v303, %v301
    %v354 = vpack.c.b16 %v306, %v304
    %v355 = vpack.c.b16 %v307, %v305
    %v356 = vpack.c.b16 %v310, %v308
    %v357 = vpack.c.b16 %v311, %v309
    %v358 = vpack.c.b16 %v314, %v312
    %v359 = vpack.c.b16 %v315, %v313
    %v360 = vpack.c.b16 %v318, %v316
    %v361 = vpack.c.b16 %v319, %v317
    %v362 = vpack.c.b16 %v322, %v320
    %v363 = vpack.c.b16 %v323, %v321
    %v364 = vpack.c.b16 %v326, %v324
    %v365 = vpack.c.b16 %v327, %v325
    %v366 = vpack.c.b16 %v330, %v328
    %v367 = vpack.c.b16 %v331, %v329
    %v368 = vpack.c.b16 %v334, %v332
    %v369 = vpack.c.b16 %v335, %v333
    %v370 = vpack.c.b16 %v338, %v336
    %v371 = vpack.c.b16 %v339, %v337
    %404 = vmatprep.subr.bf16.mxu0 %v355
    %405 = vmatpush1.bf16.msra.mxu0 %v354
    %406 = vmatprep.subr.bf16.mxu0 %v353
    %407 = vmatpush1.bf16.msra.mxu0 %v352
    %408 = vmatprep.subr.bf16.mxu0 %v351
    %409 = vmatpush1.bf16.msra.mxu0 %v350
    %410 = vmatprep.subr.bf16.mxu0 %v349
    %411 = vmatpush1.bf16.msra.mxu0 %v348
    %412 = vmatprep.subr.bf16.mxu0 %v347
    %413 = vmatpush1.bf16.msra.mxu0 %v346
    %414 = vmatprep.subr.bf16.mxu0 %v345
    %415 = vmatpush1.bf16.msra.mxu0 %v344
    %416 = vmatprep.subr.bf16.mxu0 %v343
    %417 = vmatpush1.bf16.msra.mxu0 %v342
    %418 = vmatprep.subr.bf16.mxu0 %v341
    %419 = vmatpush1.bf16.msra.mxu0 %v340
    %420 = vmatprep.subr.bf16.mxu0 %v371
    %421 = vmatpush2.bf16.msra.mxu0 %v370
    %422 = vmatprep.subr.bf16.mxu0 %v369
    %423 = vmatpush2.bf16.msra.mxu0 %v368
    %424 = vmatprep.subr.bf16.mxu0 %v367
    %425 = vmatpush2.bf16.msra.mxu0 %v366
    %426 = vmatprep.subr.bf16.mxu0 %v365
    %427 = vmatpush2.bf16.msra.mxu0 %v364
    %428 = vmatprep.subr.bf16.mxu0 %v363
    %429 = vmatpush2.bf16.msra.mxu0 %v362
    %430 = vmatprep.subr.bf16.mxu0 %v361
    %431 = vmatpush2.bf16.msra.mxu0 %v360
    %432 = vmatprep.subr.bf16.mxu0 %v359
    %433 = vmatpush2.bf16.msra.mxu0 %v358
    %434 = vmatprep.subr.bf16.mxu0 %v357
    %435 = vmatpush2.bf16.msra.mxu0 %v356
    %436 = vmatprep.mubr.bf16.mxu0 %v199
    %437 = vmatmul.mubr.bf16.gmra.mxu0 %v198
    %v438 = vpop.f32.mrf.mxu0
    %v439 = vadd.f32 %v237, %v438
    %v440 = vpop.f32.mrf.mxu0
    %v441 = vadd.f32 %v241, %v440
    %v442 = vpop.f32.mrf.mxu0
    %v443 = vpop.f32.mrf.mxu0
    %444 = vdwg.mxu0
    %v445 = vpack.c.bf16 %v439, %v439
    %v446 = vpack.c.bf16 %v441, %v441
    %v447 = vtanh.bf16.pop %v445
    %v448 = vtanh.bf16.pop %v446
    %v449 = vld [vmem:[%s5] sm:$0xf]
    %v450 = vld [vmem:[%s5 + $0x4] sm:$0xf]
    %v451 = vld [vmem:[%s5 + $0x8] sm:$0xf]
    %v452 = vld [vmem:[%s5 + $0xc] sm:$0xf]
    %v453 = vld [vmem:[%s5 + $0x10] sm:$0xf]
    %v454 = vld [vmem:[%s5 + $0x14] sm:$0xf]
    %v455 = vld [vmem:[%s5 + $0x18] sm:$0xf]
    %v456 = vld [vmem:[%s5 + $0x1c] sm:$0xf]
    %v457 = vld [vmem:[%s5 + $0x20] sm:$0xf]
    %v458 = vld [vmem:[%s5 + $0x24] sm:$0xf]
    %v459 = vld [vmem:[%s5 + $0x28] sm:$0xf]
    %v460 = vld [vmem:[%s5 + $0x2c] sm:$0xf]
    %v461 = vld [vmem:[%s5 + $0x30] sm:$0xf]
    %v462 = vld [vmem:[%s5 + $0x34] sm:$0xf]
    %v463 = vld [vmem:[%s5 + $0x38] sm:$0xf]
    %v464 = vld [vmem:[%s5 + $0x3c] sm:$0xf]
    %v465 = vld [vmem:[%s5 + $0x40] sm:$0xf]
    %v466 = vld [vmem:[%s5 + $0x44] sm:$0xf]
    %v467 = vld [vmem:[%s5 + $0x48] sm:$0xf]
    %v468 = vld [vmem:[%s5 + $0x4c] sm:$0xf]
    %v469 = vld [vmem:[%s5 + $0x50] sm:$0xf]
    %v470 = vld [vmem:[%s5 + $0x54] sm:$0xf]
    %v471 = vld [vmem:[%s5 + $0x58] sm:$0xf]
    %v472 = vld [vmem:[%s5 + $0x5c] sm:$0xf]
    %v473 = vld [vmem:[%s5 + $0x60] sm:$0xf]
    %v474 = vld [vmem:[%s5 + $0x64] sm:$0xf]
    %v475 = vld [vmem:[%s5 + $0x68] sm:$0xf]
    %v476 = vld [vmem:[%s5 + $0x6c] sm:$0xf]
    %v477 = vld [vmem:[%s5 + $0x70] sm:$0xf]
    %v478 = vld [vmem:[%s5 + $0x74] sm:$0xf]
    %v479 = vld [vmem:[%s5 + $0x78] sm:$0xf]
    %v480 = vld [vmem:[%s5 + $0x7c] sm:$0xf]
    %v481 = vld [vmem:[%s6] sm:$0x1]
    %v483 = vlaneseq
    %v484 = vshrl.u32 %v483, 7
    %v485 = vsub.s32 0, %v484
    %v486 = vrot.slane %v481, %v485
    %v520 = vunpack.c.l.b16 %v449
    %v521 = vunpack.c.l.b16 %v450
    %v522 = vunpack.c.l.b16 %v451
    %v523 = vunpack.c.l.b16 %v452
    %v524 = vunpack.c.l.b16 %v453
    %v525 = vunpack.c.l.b16 %v454
    %v526 = vunpack.c.l.b16 %v455
    %v527 = vunpack.c.l.b16 %v456
    %v528 = vunpack.c.l.b16 %v457
    %v529 = vunpack.c.l.b16 %v458
    %v530 = vunpack.c.l.b16 %v459
    %v531 = vunpack.c.l.b16 %v460
    %v532 = vunpack.c.l.b16 %v461
    %v533 = vunpack.c.l.b16 %v462
    %v534 = vunpack.c.l.b16 %v463
    %v535 = vunpack.c.l.b16 %v464
    %v536 = vunpack.c.l.b16 %v465
    %v537 = vunpack.c.l.b16 %v466
    %v538 = vunpack.c.l.b16 %v467
    %v539 = vunpack.c.l.b16 %v468
    %v540 = vunpack.c.l.b16 %v469
    %v541 = vunpack.c.l.b16 %v470
    %v542 = vunpack.c.l.b16 %v471
    %v543 = vunpack.c.l.b16 %v472
    %v544 = vunpack.c.l.b16 %v473
    %v545 = vunpack.c.l.b16 %v474
    %v546 = vunpack.c.l.b16 %v475
    %v547 = vunpack.c.l.b16 %v476
    %v548 = vunpack.c.l.b16 %v477
    %v549 = vunpack.c.l.b16 %v478
    %v550 = vunpack.c.l.b16 %v479
    %v551 = vunpack.c.l.b16 %v480
    %v552 = vpack.c.b16 %v521, %v520
    %v553 = vpack.c.b16 %v523, %v522
    %v554 = vpack.c.b16 %v525, %v524
    %v555 = vpack.c.b16 %v527, %v526
    %v556 = vpack.c.b16 %v529, %v528
    %v557 = vpack.c.b16 %v531, %v530
    %v558 = vpack.c.b16 %v533, %v532
    %v559 = vpack.c.b16 %v535, %v534
    %v560 = vpack.c.b16 %v537, %v536
    %v561 = vpack.c.b16 %v539, %v538
    %v562 = vpack.c.b16 %v541, %v540
    %v563 = vpack.c.b16 %v543, %v542
    %v564 = vpack.c.b16 %v545, %v544
    %v565 = vpack.c.b16 %v547, %v546
    %v566 = vpack.c.b16 %v549, %v548
    %v567 = vpack.c.b16 %v551, %v550
    %584 = vmatprep.subr.bf16.mxu0 0
    %585 = vmatpush1.bf16.msra.mxu0 %v559
    %586 = vmatprep.subr.bf16.mxu0 0
    %587 = vmatpush1.bf16.msra.mxu0 %v558
    %588 = vmatprep.subr.bf16.mxu0 0
    %589 = vmatpush1.bf16.msra.mxu0 %v557
    %590 = vmatprep.subr.bf16.mxu0 0
    %591 = vmatpush1.bf16.msra.mxu0 %v556
    %592 = vmatprep.subr.bf16.mxu0 0
    %593 = vmatpush1.bf16.msra.mxu0 %v555
    %594 = vmatprep.subr.bf16.mxu0 0
    %595 = vmatpush1.bf16.msra.mxu0 %v554
    %596 = vmatprep.subr.bf16.mxu0 0
    %597 = vmatpush1.bf16.msra.mxu0 %v553
    %598 = vmatprep.subr.bf16.mxu0 0
    %599 = vmatpush1.bf16.msra.mxu0 %v552
    %600 = vmatprep.subr.bf16.mxu0 0
    %601 = vmatpush2.bf16.msra.mxu0 %v567
    %602 = vmatprep.subr.bf16.mxu0 0
    %603 = vmatpush2.bf16.msra.mxu0 %v566
    %604 = vmatprep.subr.bf16.mxu0 0
    %605 = vmatpush2.bf16.msra.mxu0 %v565
    %606 = vmatprep.subr.bf16.mxu0 0
    %607 = vmatpush2.bf16.msra.mxu0 %v564
    %608 = vmatprep.subr.bf16.mxu0 0
    %609 = vmatpush2.bf16.msra.mxu0 %v563
    %610 = vmatprep.subr.bf16.mxu0 0
    %611 = vmatpush2.bf16.msra.mxu0 %v562
    %612 = vmatprep.subr.bf16.mxu0 0
    %613 = vmatpush2.bf16.msra.mxu0 %v561
    %614 = vmatprep.subr.bf16.mxu0 0
    %615 = vmatpush2.bf16.msra.mxu0 %v560
    %616 = vmatprep.mubr.bf16.mxu0 %v448
    %617 = vmatmul.mubr.bf16.gmra.mxu0 %v447
    %v618 = vpop.f32.mrf.mxu0
    %v619 = vadd.f32 %v486, %v618
    %v620 = vpop.f32.mrf.mxu0
    %v621 = vpop.f32.mrf.mxu0
    %v622 = vpop.f32.mrf.mxu0
    %623 = vdwg.mxu0
    %v624 = vpack.c.bf16 %v619, %v619
    %v626 = vmul.bf16 %v624, 1069105081
    %v627 = vpow.bf16.pop %v626
    %v628 = vld [vmem:[%s7] sm:$0xf]
    %v629 = vld [vmem:[%s7 + $0x4] sm:$0xf]
    %v630 = vld [vmem:[%s7 + $0x8] sm:$0xf]
    %v631 = vld [vmem:[%s7 + $0xc] sm:$0xf]
    %v632 = vld [vmem:[%s7 + $0x10] sm:$0xf]
    %v633 = vld [vmem:[%s7 + $0x14] sm:$0xf]
    %v634 = vld [vmem:[%s7 + $0x18] sm:$0xf]
    %v635 = vld [vmem:[%s7 + $0x1c] sm:$0xf]
    %v644 = vunpack.c.l.b16 %v628
    %v645 = vunpack.c.l.b16 %v629
    %v646 = vunpack.c.l.b16 %v630
    %v647 = vunpack.c.l.b16 %v631
    %v648 = vunpack.c.l.b16 %v632
    %v649 = vunpack.c.l.b16 %v633
    %v650 = vunpack.c.l.b16 %v634
    %v651 = vunpack.c.l.b16 %v635
    %v652 = vpack.c.b16 %v645, %v644
    %v653 = vpack.c.b16 %v647, %v646
    %v654 = vpack.c.b16 %v649, %v648
    %v655 = vpack.c.b16 %v651, %v650
    %vm660 = vcmask 523264
    %v662 = vsel %vm660, %v627, 0
    %664 = vmatprep.subr.bf16.mxu0 0
    %665 = vmatpush1.bf16.msra.mxu0 0
    %666 = vmatprep.subr.bf16.mxu0 0
    %667 = vmatpush1.bf16.msra.mxu0 0
    %668 = vmatprep.subr.bf16.mxu0 0
    %669 = vmatpush1.bf16.msra.mxu0 0
    %670 = vmatprep.subr.bf16.mxu0 0
    %671 = vmatpush1.bf16.msra.mxu0 0
    %672 = vmatprep.subr.bf16.mxu0 0
    %673 = vmatpush1.bf16.msra.mxu0 %v655
    %674 = vmatprep.subr.bf16.mxu0 0
    %675 = vmatpush1.bf16.msra.mxu0 %v654
    %676 = vmatprep.subr.bf16.mxu0 0
    %677 = vmatpush1.bf16.msra.mxu0 %v653
    %678 = vmatprep.subr.bf16.mxu0 0
    %679 = vmatpush1.bf16.msra.mxu0 %v652
    %680 = vmatprep.subr.bf16.mxu0 0
    %681 = vmatpush2.bf16.msra.mxu0 0
    %682 = vmatprep.subr.bf16.mxu0 0
    %683 = vmatpush2.bf16.msra.mxu0 0
    %684 = vmatprep.subr.bf16.mxu0 0
    %685 = vmatpush2.bf16.msra.mxu0 0
    %686 = vmatprep.subr.bf16.mxu0 0
    %687 = vmatpush2.bf16.msra.mxu0 0
    %688 = vmatprep.subr.bf16.mxu0 0
    %689 = vmatpush2.bf16.msra.mxu0 0
    %690 = vmatprep.subr.bf16.mxu0 0
    %691 = vmatpush2.bf16.msra.mxu0 0
    %692 = vmatprep.subr.bf16.mxu0 0
    %693 = vmatpush2.bf16.msra.mxu0 0
    %694 = vmatprep.subr.bf16.mxu0 0
    %695 = vmatpush2.bf16.msra.mxu0 0
    %696 = vmatprep.mubr.bf16.mxu0 0
    %697 = vmatmul.mubr.bf16.gmra.mxu0 %v662
    %v698 = vpop.f32.mrf.mxu0
    %v699 = vadd.f32 0.0, %v698
    %v700 = vpop.f32.mrf.mxu0
    %v701 = vpop.f32.mrf.mxu0
    %v702 = vpop.f32.mrf.mxu0
    %703 = vdwg.mxu0
    %v704 = vrcp.pop %v699
    %v705 = vmul.f32 %v699, %v704
    %v706 = vsub.f32 2.0, %v705
    %v707 = vmul.f32 %v704, %v706
    %v708 = vmul.f32 %v699, %v707
    %v709 = vsub.f32 2.0, %v708
    %v710 = vmul.f32 %v707, %v709
    %v711 = vunpack.c.l.bf16 %v627
    %v712 = vmul.f32 %v711, %v710
    %713 = vst.msk [vmem:[#allocation5] sm:$0xff] %vm660, %v712
    // Predicated region
    $region38: #{tpu_custom_call.1} parent=1 // pred_check
      _
    $region39: #{tpu_custom_call.1} parent=1 // pred_check_branch
      %715 = sbr.rel (0) target = $region41
    $region40: #{tpu_custom_call.1} parent=1 // pred_region
      %s717 = ssub.s32 128, 128
      %718 = vsyncadd [#allocation4], %s717
      %s720 = sshll.u32 [#allocation5], 4
      %s721 = int_to_ptr.vmem [resolvable:$true] %s720
      %723 = dma.vmem_to_hbm [thread:$0]  %s721, 128, %s8, [#allocation4]
    $region41: #{tpu_custom_call.1} parent=1 // pred_fallthru
      _
    // Predicated region
    $region42: #{tpu_custom_call.1} parent=1 // pred_check
      _
    $region43: #{tpu_custom_call.1} parent=1 // pred_check_branch
      %725 = sbr.rel (0) target = $region45
    $region44: #{tpu_custom_call.1} parent=1 // pred_region
      %726 = dma.done [#allocation4], 128
    $region45: #{tpu_custom_call.1} parent=1 // pred_fallthru
      _
    %727 = vsyncpa [#allocation3], 1
    %728 = vsyncpa [#allocation4], 1

</llo_original>
